<compile_context>
chip_gen: v7x
topology: tpu7x:2x2x1
jax: 0.10.0
libtpu: 0.0.40
codegen_flags: <defaults>
</compile_context>

<pallas_src>
import functools

import jax
import jax.numpy as jnp
from jax.experimental import pallas as pl
from jax.experimental.pallas import tpu as pltpu


def nmfnet_kernel(sm_ref, winv_ref, x_ref, out_ref):
    """Per-grid-step body.

    sm_ref   : (X_height, k)   softmax(W, axis=0)  (VMEM-resident, constant block)
    winv_ref : (k, X_height)   W_inv               (VMEM-resident, constant block)
    x_ref    : (X_height, TN)  streamed tile of X
    out_ref  : (X_height, TN)  streamed tile of X_hat
    """
    # H = relu(W_inv @ X_tile)  -> (k, TN), f32 accumulation on the MXU.
    h = jnp.maximum(
        jnp.dot(winv_ref[...], x_ref[...], preferred_element_type=jnp.float32),
        0.0,
    ).astype(x_ref.dtype)

    # X_hat_tile = softmax(W) @ H  -> (X_height, TN)
    out_ref[...] = jnp.dot(
        sm_ref[...], h, preferred_element_type=jnp.float32
    ).astype(out_ref.dtype)


def _round_up(x, m):
    return ((x + m - 1) // m) * m


def _vmem_capacity_bytes():
    """Physical VMEM of the local TPU (fallback: 64 MiB, the v7x per-TC size)."""
    try:
        info = pltpu.get_tpu_info()
        return int(getattr(info, "vmem_capacity_bytes", 64 << 20))
    except Exception:
        return 64 << 20


def _choose_tn(x_height, k, n, stream_budget_bytes, dtype_bytes):
    """Pick a lane-dense tile width for the streamed X / X_hat columns."""
    per_col = 2 * x_height * dtype_bytes  # one X column + one X_hat column
    # Target ~4 MiB of streamed bytes per grid step: amortizes the ~0.35 us
    # per-step pipeline overhead (128-wide tiles reach only ~29% of the HBM
    # roofline; 512+ wide tiles reach ~85%).
    tn = _round_up(pl.cdiv(4 << 20, per_col), 128)
    # VMEM cap: double-buffered X/out tiles plus the (k, TN) H temporary
    # (and its relu intermediate) must fit inside the streaming budget.
    denom = 2 * per_col + 2 * k * 4
    tn_cap = max(128, (stream_budget_bytes // denom) // 128 * 128)
    tn = min(tn, tn_cap)
    # Never wider than N rounded up to a lane multiple.
    tn = min(tn, _round_up(n, 128))
    # If one tile covers all of N, use a full-extent block (no ragged masking,
    # and full-extent blocks are exempt from the (8,128) divisibility rule).
    if tn >= n:
        tn = n
    return max(tn, 1)


@functools.partial(jax.jit, static_argnames=("tn",))
def nmfnet_forward(W, W_inv, X, *, tn=None):
    """X_hat = softmax(W, axis=0) @ relu(W_inv @ X).

    X / X_hat are streamed in X.dtype (pass a bf16 X for the half-bandwidth
    path, tolerance ~1e-3); MXU accumulation is always f32.
    """
    X_height, k = W.shape
    xh2, N = X.shape
    assert xh2 == X_height, "X height must match W's row count"

    stream_dtype = X.dtype
    dtype_bytes = jnp.dtype(stream_dtype).itemsize

    # Grid-invariant preprocessing: softmax(W) computed once, not per step.
    sm = jax.nn.softmax(W, axis=0).astype(stream_dtype)
    winv = W_inv.astype(stream_dtype)

    # Generation-aware VMEM budgeting (128 MiB v5e/v6e, 64 MiB per TC v7x),
    # keeping ~16 MiB headroom for Mosaic internal scratch.
    vmem_cap = _vmem_capacity_bytes()
    usable = max(32 << 20, vmem_cap - (16 << 20))

    resident_bytes = 2 * 2 * X_height * k * dtype_bytes  # sm + W_inv, double-buffered
    stream_budget = max(8 << 20, usable - resident_bytes - (4 << 20))

    if tn is None:
        tn = _choose_tn(X_height, k, N, stream_budget, dtype_bytes)
    assert tn == N or tn % 128 == 0, "tn must cover N or be a multiple of 128"

    num_blocks = pl.cdiv(N, tn)

    # Scoped-VMEM limit: double-buffered X/out tiles + resident weights +
    # per-step H temporary + margin, clamped to the usable capacity.
    tile_bytes = 2 * 2 * X_height * tn * dtype_bytes
    temp_bytes = 2 * k * tn * 4
    vmem_limit = int(min(usable, tile_bytes + resident_bytes + temp_bytes + (4 << 20)))
    vmem_limit = max(vmem_limit, 16 << 20)

    return pl.pallas_call(
        nmfnet_kernel,
        out_shape=jax.ShapeDtypeStruct((X_height, N), stream_dtype),
        grid=(num_blocks,),
        in_specs=[
            # sm, W_inv: constant block index -> DMA'd once, resident in VMEM.
            pl.BlockSpec((X_height, k), lambda j: (0, 0)),
            pl.BlockSpec((k, X_height), lambda j: (0, 0)),
            # X: streamed lane-dense column tiles, auto double-buffered;
            # the last block may be ragged (masked writeback handles it).
            pl.BlockSpec((X_height, tn), lambda j: (0, j)),
        ],
        out_specs=pl.BlockSpec((X_height, tn), lambda j: (0, j)),
        compiler_params=pltpu.CompilerParams(
            dimension_semantics=("parallel",),
            vmem_limit_bytes=vmem_limit,
        ),
    )(sm, winv, X)


def init_params(key, X_height, k):
    """Deterministic synthetic init mirroring NMFNet.__init__:
    W ~ U(0,1) column-normalized; W_inv = pinv(W)."""
    w = jax.random.uniform(
        key, (X_height, k), dtype=jnp.float32, minval=0.0, maxval=1.0
    )
    w = w / jnp.sum(w, axis=0, keepdims=True)
    w_inv = jnp.linalg.pinv(w).astype(jnp.float32)
    return w, w_inv


def reference_forward(W, W_inv, X):
    H = jnp.maximum(W_inv @ X, 0.0)
    return jax.nn.softmax(W, axis=0) @ H


if __name__ == "__main__":
    key = jax.random.PRNGKey(0)
    k_w, k_x, k_x2 = jax.random.split(key, 3)

    X_height, k, N = 32, 8, 64
    W, W_inv = init_params(k_w, X_height, k)
    X = jax.random.uniform(k_x, (X_height, N), dtype=jnp.float32)

    out = jax.block_until_ready(nmfnet_forward(W, W_inv, X))
    ref = reference_forward(W, W_inv, X)
    assert out.shape == (X_height, N)
    assert jnp.allclose(out, ref, atol=1e-5, rtol=1e-5), "mismatch vs reference"

    # Ragged-N path: N is not a multiple of the tile width and there is no
    # wrapper pad/slice -- the last grid block is handled by masked writeback.
    N2 = 200
    X2 = jax.random.uniform(k_x2, (X_height, N2), dtype=jnp.float32)
    out2 = jax.block_until_ready(nmfnet_forward(W, W_inv, X2, tn=128))
    ref2 = reference_forward(W, W_inv, X2)
    assert out2.shape == (X_height, N2)
    assert jnp.allclose(out2, ref2, atol=1e-5, rtol=1e-5), "ragged mismatch"

    print("KERNEL_OK")
</pallas_src>

<mosaic_0001>
module attributes {stable_mosaic.version = 11 : i64} {
  func.func @nmfnet_kernel(%arg0: i32, %arg1: memref<32x8xf32, #tpu.memory_space<vmem>>, %arg2: memref<8x32xf32, #tpu.memory_space<vmem>>, %arg3: memref<32x64xf32, #tpu.memory_space<vmem>>, %arg4: memref<32x64xf32, #tpu.memory_space<vmem>>) attributes {dimension_semantics = [#tpu.dimension_semantics<parallel>], iteration_bounds = array<i64: 1>, scalar_prefetch = 0 : i64, scratch_operands = 0 : i64, tpu.core_type = #tpu.core_type<tc>, window_params = [{pipeline_mode = #tpu.pipeline_mode<synchronous>, transform_indices = @transform_0, window_bounds = array<i64: 32, 8>}, {pipeline_mode = #tpu.pipeline_mode<synchronous>, transform_indices = @transform_1, window_bounds = array<i64: 8, 32>}, {transform_indices = @transform_2, window_bounds = array<i64: 32, 64>}, {transform_indices = @transform_3, window_bounds = array<i64: 32, 64>}]} {
    %c0 = arith.constant 0 : index
    %c0_0 = arith.constant 0 : index
    %0 = vector.load %arg2[%c0, %c0_0] : memref<8x32xf32, #tpu.memory_space<vmem>>, vector<8x32xf32>
    %c0_1 = arith.constant 0 : index
    %c0_2 = arith.constant 0 : index
    %1 = vector.load %arg3[%c0_1, %c0_2] : memref<32x64xf32, #tpu.memory_space<vmem>>, vector<32x64xf32>
    %cst = arith.constant dense<0.000000e+00> : vector<8x64xf32>
    %2 = tpu.matmul %0, %1, %cst {dimension_numbers = #tpu.dot_dimension_numbers<[1], [0], [0], [1], [0, 0, 1, 1], [], []>} : vector<8x32xf32>, vector<32x64xf32>, vector<8x64xf32> -> vector<8x64xf32>
    %cst_3 = arith.constant 0.000000e+00 : f32
    %3 = vector.broadcast %cst_3 : f32 to vector<8x64xf32>
    %4 = arith.maximumf %2, %3 : vector<8x64xf32>
    %c0_4 = arith.constant 0 : index
    %c0_5 = arith.constant 0 : index
    %5 = vector.load %arg1[%c0_4, %c0_5] : memref<32x8xf32, #tpu.memory_space<vmem>>, vector<32x8xf32>
    %cst_6 = arith.constant dense<0.000000e+00> : vector<32x64xf32>
    %6 = tpu.matmul %5, %4, %cst_6 {dimension_numbers = #tpu.dot_dimension_numbers<[1], [0], [0], [1], [0, 0, 1, 1], [], []>} : vector<32x8xf32>, vector<8x64xf32>, vector<32x64xf32> -> vector<32x64xf32>
    %c0_7 = arith.constant 0 : index
    %c0_8 = arith.constant 0 : index
    %7 = vector.load %arg4[%c0_7, %c0_8] : memref<32x64xf32, #tpu.memory_space<vmem>>, vector<32x64xf32>
    tpu.vector_store %arg4[%c0_7, %c0_8], %6 {strides = array<i32>} : memref<32x64xf32, #tpu.memory_space<vmem>>, vector<32x64xf32>,
    return
  }
  func.func @transform_0(%arg0: i32) -> (i32, i32) {
    %c0_i32 = arith.constant 0 : i32
    %c0_i32_0 = arith.constant 0 : i32
    %c0_i32_1 = arith.constant 0 : i32
    return %c0_i32, %c0_i32_0 : i32, i32
  }
  func.func @transform_1(%arg0: i32) -> (i32, i32) {
    %c0_i32 = arith.constant 0 : i32
    %c0_i32_0 = arith.constant 0 : i32
    %c0_i32_1 = arith.constant 0 : i32
    return %c0_i32, %c0_i32_0 : i32, i32
  }
  func.func @transform_2(%arg0: i32) -> (i32, i32) {
    %c0_i32 = arith.constant 0 : i32
    %c0_i32_0 = arith.constant 0 : i32
    return %c0_i32, %arg0 : i32, i32
  }
  func.func @transform_3(%arg0: i32) -> (i32, i32) {
    %c0_i32 = arith.constant 0 : i32
    %c0_i32_0 = arith.constant 0 : i32
    return %c0_i32, %arg0 : i32, i32
  }
}

</mosaic_0001>

<llo_original>
// kernel: nmfnet_forward.1
$region0: #{nmfnet_forward.1}
  #allocation0 [shape = 'u32[]', space=smem, size = 0x4, offset = 0x4, fixed_abs, tag = 'smem constant byte address 0x4 - core index']
  #allocation1 [shape = 'u32[144,128]{1,0:T(1,128)}', space=vmem, size = 0x12000, scoped, tag = 'internal scratch']
  %s0 = inlined_call_operand.vmem [shape: f32[32,8], index: 0, kind: input, shape index: {}]
  %s1 = inlined_call_operand.vmem [shape: f32[8,32], index: 1, kind: input, shape index: {}]
  %s2 = inlined_call_operand.vmem [shape: f32[32,64], index: 2, kind: input, shape index: {}]
  %s3 = inlined_call_operand.hbm [shape: f32[32,64], index: 3, kind: output, shape index: {}]
  %s4 = sld [smem:[#allocation0]]
  $region22: #{nmfnet_forward.1} parent=0
    _
  %s6 = ssub.s32 1, %s4
  %s7 = scalar_select 0, %s6, %s4
  $region1: #{nmfnet_forward.1} parent=0
    #allocation2 [shape = 'u8[16384]{0}', space=vmem, size = 0x4000, scoped, tag = 'output window, operand 0, single buffered']
    #allocation3 [shape = 's32[1]{0}', space=sflag, size = 0x4, scoped, tag = 'scoped memory for nmfnet_forward.1']
    %8 = vsyncpa [#allocation3], 0
    // Predicated region
    $region2: #{nmfnet_forward.1} parent=1 // pred_check
      _
    $region3: #{nmfnet_forward.1} parent=1 // pred_check_branch
      %10 = sbr.rel (0) target = $region5
    $region4: #{nmfnet_forward.1} parent=1 // pred_region
      _
    $region5: #{nmfnet_forward.1} parent=1 // pred_fallthru
      _
    // Predicated region
    $region6: #{nmfnet_forward.1} parent=1 // pred_check
      _
    $region7: #{nmfnet_forward.1} parent=1 // pred_check_branch
      %12 = sbr.rel (0) target = $region9
    $region8: #{nmfnet_forward.1} parent=1 // pred_region
      _
    $region9: #{nmfnet_forward.1} parent=1 // pred_fallthru
      _
    // Predicated region
    $region10: #{nmfnet_forward.1} parent=1 // pred_check
      _
    $region11: #{nmfnet_forward.1} parent=1 // pred_check_branch
      %14 = sbr.rel (0) target = $region13
    $region12: #{nmfnet_forward.1} parent=1 // pred_region
      _
    $region13: #{nmfnet_forward.1} parent=1 // pred_fallthru
      _
    %v15 = vld [vmem:[%s1] sm:$0xff]
    %v16 = vld [vmem:[%s2] sm:$0xff]
    %v17 = vld [vmem:[%s2 + $0x8] sm:$0xff]
    %v18 = vld [vmem:[%s2 + $0x10] sm:$0xff]
    %v19 = vld [vmem:[%s2 + $0x18] sm:$0xff]
    %vm20 = vcmask 261120
    %v22 = vsel %vm20, %v15, 0
    %24 = vmatprep.subr.mxu0 0.0
    %25 = vmatpush1.msra.mxu0 %v16
    %26 = vmatprep.subr.mxu0 0.0
    %27 = vmatpush1.msra.mxu0 %v17
    %28 = vmatprep.subr.mxu0 0.0
    %29 = vmatpush1.msra.mxu0 %v18
    %30 = vmatprep.subr.mxu0 0.0
    %31 = vmatpush1.msra.mxu0 %v19
    %32 = vmatprep.subr.mxu0 0.0
    %33 = vmatpush1.msra.mxu0 0.0
    %34 = vmatprep.subr.mxu0 0.0
    %35 = vmatpush1.msra.mxu0 0.0
    %36 = vmatprep.subr.mxu0 0.0
    %37 = vmatpush1.msra.mxu0 0.0
    %38 = vmatprep.subr.mxu0 0.0
    %39 = vmatpush1.msra.mxu0 0.0
    %40 = vmatprep.subr.mxu0 0.0
    %41 = vmatpush1.msra.mxu0 0.0
    %42 = vmatprep.subr.mxu0 0.0
    %43 = vmatpush1.msra.mxu0 0.0
    %44 = vmatprep.subr.mxu0 0.0
    %45 = vmatpush1.msra.mxu0 0.0
    %46 = vmatprep.subr.mxu0 0.0
    %47 = vmatpush1.msra.mxu0 0.0
    %48 = vmatprep.subr.mxu0 0.0
    %49 = vmatpush1.msra.mxu0 0.0
    %50 = vmatprep.subr.mxu0 0.0
    %51 = vmatpush1.msra.mxu0 0.0
    %52 = vmatprep.subr.mxu0 0.0
    %53 = vmatpush1.msra.mxu0 0.0
    %54 = vmatprep.subr.mxu0 0.0
    %55 = vmatpush1.msra.mxu0 0.0
    %56 = vmatprep.subr.mxu0 0.0
    %57 = vmatpush1.msra.mxu0 0.0
    %58 = vmatprep.subr.mxu0 0.0
    %59 = vmatpush1.msra.mxu0 0.0
    %60 = vmatprep.subr.mxu0 0.0
    %61 = vmatpush1.msra.mxu0 0.0
    %62 = vmatprep.subr.mxu0 0.0
    %63 = vmatpush1.msra.mxu0 0.0
    %64 = vmatprep.subr.mxu0 0.0
    %65 = vmatpush1.msra.mxu0 0.0
    %66 = vmatprep.subr.mxu0 0.0
    %67 = vmatpush1.msra.mxu0 0.0
    %68 = vmatprep.subr.mxu0 0.0
    %69 = vmatpush1.msra.mxu0 0.0
    %70 = vmatprep.subr.mxu0 0.0
    %71 = vmatpush1.msra.mxu0 0.0
    %72 = vmatprep.subr.mxu0 0.0
    %73 = vmatpush1.msra.mxu0 0.0
    %74 = vmatprep.subr.mxu0 0.0
    %75 = vmatpush1.msra.mxu0 0.0
    %76 = vmatprep.subr.mxu0 0.0
    %77 = vmatpush1.msra.mxu0 0.0
    %78 = vmatprep.subr.mxu0 0.0
    %79 = vmatpush1.msra.mxu0 0.0
    %80 = vmatprep.subr.mxu0 0.0
    %81 = vmatpush1.msra.mxu0 0.0
    %82 = vmatprep.subr.mxu0 0.0
    %83 = vmatpush1.msra.mxu0 0.0
    %84 = vmatprep.subr.mxu0 0.0
    %85 = vmatpush1.msra.mxu0 0.0
    %86 = vmatprep.subr.mxu0 0.0
    %87 = vmatpush1.msra.mxu0 0.0
    %88 = vmatprep.mubr.f32.mxu0 0.0
    %89 = vmatmul.mubr.f32.gmra.mrb[0].mxu0 %v22
    %v90 = vpop.f32.mrb[0].mxu0
    %v91 = vadd.f32 0.0, %v90
    %v92 = vpop.f32.mrb[0].mxu0
    %93 = vdwg.mxu0
    %v94 = vmax.f32 %v91, 0.0
    %v95 = vld [vmem:[%s0] sm:$0xff]
    %v96 = vld [vmem:[%s0 + $0x8] sm:$0xff]
    %v97 = vld [vmem:[%s0 + $0x10] sm:$0xff]
    %v98 = vld [vmem:[%s0 + $0x18] sm:$0xff]
    %vm99 = vcmask 64512
    %v101 = vsel %vm99, %v95, 0
    %v104 = vsel %vm99, %v96, 0
    %v107 = vsel %vm99, %v97, 0
    %v110 = vsel %vm99, %v98, 0
    %112 = vmatprep.subr.mxu0 0.0
    %113 = vmatpush1.msra.mxu0 %v94
    %114 = vmatprep.subr.mxu0 0.0
    %115 = vmatpush1.msra.mxu0 0.0
    %116 = vmatprep.subr.mxu0 0.0
    %117 = vmatpush1.msra.mxu0 0.0
    %118 = vmatprep.subr.mxu0 0.0
    %119 = vmatpush1.msra.mxu0 0.0
    %120 = vmatprep.subr.mxu0 0.0
    %121 = vmatpush1.msra.mxu0 0.0
    %122 = vmatprep.subr.mxu0 0.0
    %123 = vmatpush1.msra.mxu0 0.0
    %124 = vmatprep.subr.mxu0 0.0
    %125 = vmatpush1.msra.mxu0 0.0
    %126 = vmatprep.subr.mxu0 0.0
    %127 = vmatpush1.msra.mxu0 0.0
    %128 = vmatprep.subr.mxu0 0.0
    %129 = vmatpush1.msra.mxu0 0.0
    %130 = vmatprep.subr.mxu0 0.0
    %131 = vmatpush1.msra.mxu0 0.0
    %132 = vmatprep.subr.mxu0 0.0
    %133 = vmatpush1.msra.mxu0 0.0
    %134 = vmatprep.subr.mxu0 0.0
    %135 = vmatpush1.msra.mxu0 0.0
    %136 = vmatprep.subr.mxu0 0.0
    %137 = vmatpush1.msra.mxu0 0.0
    %138 = vmatprep.subr.mxu0 0.0
    %139 = vmatpush1.msra.mxu0 0.0
    %140 = vmatprep.subr.mxu0 0.0
    %141 = vmatpush1.msra.mxu0 0.0
    %142 = vmatprep.subr.mxu0 0.0
    %143 = vmatpush1.msra.mxu0 0.0
    %144 = vmatprep.subr.mxu0 0.0
    %145 = vmatpush1.msra.mxu0 0.0
    %146 = vmatprep.subr.mxu0 0.0
    %147 = vmatpush1.msra.mxu0 0.0
    %148 = vmatprep.subr.mxu0 0.0
    %149 = vmatpush1.msra.mxu0 0.0
    %150 = vmatprep.subr.mxu0 0.0
    %151 = vmatpush1.msra.mxu0 0.0
    %152 = vmatprep.subr.mxu0 0.0
    %153 = vmatpush1.msra.mxu0 0.0
    %154 = vmatprep.subr.mxu0 0.0
    %155 = vmatpush1.msra.mxu0 0.0
    %156 = vmatprep.subr.mxu0 0.0
    %157 = vmatpush1.msra.mxu0 0.0
    %158 = vmatprep.subr.mxu0 0.0
    %159 = vmatpush1.msra.mxu0 0.0
    %160 = vmatprep.subr.mxu0 0.0
    %161 = vmatpush1.msra.mxu0 0.0
    %162 = vmatprep.subr.mxu0 0.0
    %163 = vmatpush1.msra.mxu0 0.0
    %164 = vmatprep.subr.mxu0 0.0
    %165 = vmatpush1.msra.mxu0 0.0
    %166 = vmatprep.subr.mxu0 0.0
    %167 = vmatpush1.msra.mxu0 0.0
    %168 = vmatprep.subr.mxu0 0.0
    %169 = vmatpush1.msra.mxu0 0.0
    %170 = vmatprep.subr.mxu0 0.0
    %171 = vmatpush1.msra.mxu0 0.0
    %172 = vmatprep.subr.mxu0 0.0
    %173 = vmatpush1.msra.mxu0 0.0
    %174 = vmatprep.subr.mxu0 0.0
    %175 = vmatpush1.msra.mxu0 0.0
    %176 = vmatprep.mubr.f32.mxu0 0.0
    %177 = vmatmul.mubr.f32.gmra.mrb[0].mxu0 %v101
    %v178 = vpop.f32.mrb[0].mxu0
    %v179 = vadd.f32 0.0, %v178
    %v180 = vpop.f32.mrb[0].mxu0
    %181 = vmatprep.mubr.f32.mxu0 0.0
    %182 = vmatmul.mubr.f32.gmra.mrb[0].mxu0 %v104
    %v183 = vpop.f32.mrb[0].mxu0
    %v184 = vadd.f32 0.0, %v183
    %v185 = vpop.f32.mrb[0].mxu0
    %186 = vmatprep.mubr.f32.mxu0 0.0
    %187 = vmatmul.mubr.f32.gmra.mrb[0].mxu0 %v107
    %v188 = vpop.f32.mrb[0].mxu0
    %v189 = vadd.f32 0.0, %v188
    %v190 = vpop.f32.mrb[0].mxu0
    %191 = vmatprep.mubr.f32.mxu0 0.0
    %192 = vmatmul.mubr.f32.gmra.mrb[0].mxu0 %v110
    %v193 = vpop.f32.mrb[0].mxu0
    %v194 = vadd.f32 0.0, %v193
    %v195 = vpop.f32.mrb[0].mxu0
    %196 = vdwg.mxu0
    %vm197 = vcmask 523264
    %198 = vst.msk [vmem:[#allocation2] sm:$0xff] %vm197, %v179
    %199 = vst.msk [vmem:[#allocation2 + $0x8] sm:$0xff] %vm197, %v184
    %200 = vst.msk [vmem:[#allocation2 + $0x10] sm:$0xff] %vm197, %v189
    %201 = vst.msk [vmem:[#allocation2 + $0x18] sm:$0xff] %vm197, %v194
    // Predicated region
    $region14: #{nmfnet_forward.1} parent=1 // pred_check
      _
    $region15: #{nmfnet_forward.1} parent=1 // pred_check_branch
      %203 = sbr.rel (0) target = $region17
    $region16: #{nmfnet_forward.1} parent=1 // pred_region
      %s205 = ssub.s32 512, 512
      %206 = vsyncadd [#allocation3], %s205
      %s207 = sshll.u32 [#allocation2], 4
      %s208 = int_to_ptr.vmem [resolvable:$true] %s207
      %213 = dma.vmem_to_hbm [thread:$0]  %s208, 512, %s3, [#allocation3], 128, 128, 8
    $region17: #{nmfnet_forward.1} parent=1 // pred_fallthru
      _
    // Predicated region
    $region18: #{nmfnet_forward.1} parent=1 // pred_check
      _
    $region19: #{nmfnet_forward.1} parent=1 // pred_check_branch
      %215 = sbr.rel (0) target = $region21
    $region20: #{nmfnet_forward.1} parent=1 // pred_region
      %216 = dma.done [#allocation3], 512
    $region21: #{nmfnet_forward.1} parent=1 // pred_fallthru
      _
    %217 = vsyncpa [#allocation3], 1

</llo_original>
